<compile_context>
chip_gen: v6e
topology: v6e:2x2x1
jax: 0.10.0
libtpu: 0.0.40
codegen_flags: <defaults>
</compile_context>

<pallas_src>
import jax
import jax.numpy as jnp
from jax import lax
from jax.experimental import pallas as pl
from jax.experimental.pallas import tpu as pltpu

_INV_SQRT2 = 0.7071067811865476  # 1/sqrt(2)
_MiB = 1024 * 1024

_TM_TARGETS = (1024, 768, 512, 384, 256, 192, 128, 96, 64, 32, 16, 8)
_TK_TARGETS = (2048, 1536, 1024, 768, 512, 384, 256, 128)


def _round_up(x, m):
    return ((x + m - 1) // m) * m


def _aligned_divisor(dim, target, align):
    """Largest multiple of `align` that divides `dim` and is <= target.
    Returns the full `dim` when dim <= target or dim isn't align-divisible
    (a full-extent block is always layout-legal)."""
    if dim <= target or dim % align != 0:
        return dim
    t = (min(target, dim) // align) * align
    while t >= align:
        if dim % t == 0:
            return t
        t -= align
    return dim


def _tpu_vmem_and_cores():
    """Best-effort query of per-core VMEM capacity and TensorCores per chip."""
    vmem = 64 * _MiB  # conservative default == v7x per-core VMEM
    cores = 1
    try:
        info = pltpu.get_tpu_info()
        v = getattr(info, "vmem_capacity_bytes", None)
        if v:
            vmem = int(v)
        for name in ("num_cores", "core_count", "tensorcore_count",
                     "num_tensorcores", "cores_per_chip"):
            c = getattr(info, name, None)
            if c:
                cores = int(c)
                break
    except Exception:
        pass
    return vmem, cores


def _select_tiles(T, H, H4, x_bytes, w_bytes, o_bytes, budget, cores):
    """VMEM-aware (tm, tk) selection: prefer large tm, then large tk."""

    def footprint(tm, tk):
        weights = 2 * (2 * H * tk + tk) * w_bytes            # w1+w2+b1, double-buffered
        token = tm * H * (x_bytes + 2 * o_bytes + 4)          # x (1 buf) + out (2) + f32 acc
        return weights + token + 2 * H * w_bytes              # + b2

    def two_tile_tm(tm):
        # v7x has 2 TensorCores per chip: keep >=2 tiles on the parallel axis.
        if cores >= 2 and T > 8 and pl.cdiv(T, tm) < 2:
            return max(8, _round_up((T + 1) // 2, 8))
        return tm

    for tm_t in _TM_TARGETS:
        tm = T if T <= tm_t else tm_t
        for tk_t in _TK_TARGETS:
            tk = _aligned_divisor(H4, tk_t, 128)
            if footprint(tm, tk) <= budget:
                return two_tile_tm(tm), tk
    # Nothing fit (pathologically large H): smallest combo, rely on the
    # compiler's vmem limit rather than silently blowing up tile sizes.
    tm = T if T <= _TM_TARGETS[-1] else _TM_TARGETS[-1]
    return two_tile_tm(tm), _aligned_divisor(H4, _TK_TARGETS[-1], 128)


def _make_kernel(nk, use_tanh_gelu=False):
    """Fused MLP kernel body for a K-grid of `nk` steps."""

    def kernel(x_ref, w1_ref, b1_ref, w2_ref, b2_ref, o_ref, *scratch):
        # dense_h_to_4h chunk: (tm, H) @ (H, tk) on the MXU, f32 accumulation.
        h = jnp.dot(x_ref[...], w1_ref[...], preferred_element_type=jnp.float32)
        h = h + b1_ref[...].astype(jnp.float32)

        # GELU in f32 (v5e has no bf16 VPU/EUP path).
        if use_tanh_gelu:  # HF BloomGelu variant
            g = 0.5 * h * (1.0 + jnp.tanh(
                0.7978845608028654 * h * (1.0 + 0.044715 * h * h)))
        else:              # exact erf GELU == torch.nn.GELU()
            g = h * (0.5 * (1.0 + lax.erf(h * _INV_SQRT2)))

        # dense_4h_to_h chunk: (tm, tk) @ (tk, H), f32 partial product.
        partial = jnp.dot(g.astype(w2_ref.dtype), w2_ref[...],
                          preferred_element_type=jnp.float32)

        if nk == 1:
            # Single K step: no accumulator round-trip at all.
            o_ref[...] = (partial + b2_ref[...].astype(jnp.float32)
                          ).astype(o_ref.dtype)
        else:
            acc_ref = scratch[0]
            k = pl.program_id(1)

            @pl.when(k == 0)
            def _first():
                acc_ref[...] = partial            # write, no zero-init + reload

            @pl.when(jnp.logical_and(k > 0, k < nk - 1))
            def _middle():
                acc_ref[...] += partial

            @pl.when(k == nk - 1)
            def _last():
                # Fold the last partial straight into the output tile: saves a
                # full (tm, H) f32 accumulator store + load per output tile.
                o_ref[...] = (acc_ref[...] + partial
                              + b2_ref[...].astype(jnp.float32)
                              ).astype(o_ref.dtype)

    return kernel


def bloom_mlp(x, w1, b1, w2, b2, *, tm=None, tk=None, use_tanh_gelu=False):
    """y = gelu(x @ w1 + b1) @ w2 + b2, fused on-TPU."""
    T, H = x.shape
    H4 = w1.shape[1]
    assert w1.shape == (H, H4) and w2.shape == (H4, H)
    b1 = b1.reshape(1, H4)
    b2 = b2.reshape(1, H)

    x_bytes = jnp.dtype(x.dtype).itemsize
    w_bytes = jnp.dtype(w1.dtype).itemsize
    o_bytes = x_bytes

    vmem_phys, cores = _tpu_vmem_and_cores()
    tile_budget = (vmem_phys * 3) // 4   # ~48 MiB on v7x, ~96 MiB on v5e/v6e
    vmem_limit = (vmem_phys * 7) // 8    # ~56 MiB on v7x, ~112 MiB on v5e/v6e

    if tm is None or tk is None:
        tm_auto, tk_auto = _select_tiles(T, H, H4, x_bytes, w_bytes, o_bytes,
                                         tile_budget, cores)
        tm = tm_auto if tm is None else tm
        tk = tk_auto if tk is None else tk

    # Sanitize tiles: token tiles either cover all of T (full-extent block) or
    # are a multiple of 8 with T zero-padded up to a tile multiple; K tiles
    # are a 128-aligned divisor of 4H (or the full 4H).
    if tm >= T:
        tm = T
        T_pad = T
    else:
        tm = max(8, (tm // 8) * 8)
        T_pad = _round_up(T, tm)
    if tk >= H4:
        tk = H4
    elif H4 % tk != 0 or tk % 128 != 0:
        tk = _aligned_divisor(H4, tk, 128)
    nk = H4 // tk if tk < H4 else 1

    x_in = x if T_pad == T else jnp.pad(x, ((0, T_pad - T), (0, 0)))

    grid = (T_pad // tm, nk)
    n_m = grid[0]

    cost = pl.CostEstimate(
        flops=4 * T_pad * H * H4,          # two matmuls, 2*T*H*4H each
        transcendentals=T_pad * H4,        # one erf/tanh per intermediate elem
        bytes_accessed=int(
            x_in.size * x_bytes
            + T * H * o_bytes
            + n_m * (w1.size * w_bytes                       # weights re-streamed
                     + b1.size * jnp.dtype(b1.dtype).itemsize  # once per token tile
                     + w2.size * jnp.dtype(w2.dtype).itemsize)
            + b2.size * jnp.dtype(b2.dtype).itemsize),
    )

    kernel = _make_kernel(nk, use_tanh_gelu)
    scratch = [pltpu.VMEM((tm, H), jnp.float32)] if nk > 1 else []

    def run(x_single_buffered):
        x_kwargs = {}
        if x_single_buffered:
            # x's block index only changes once per full K sweep: a second
            # buffer buys nothing and costs tm*H*itemsize of VMEM headroom.
            x_kwargs["pipeline_mode"] = pl.Buffered(1)
        return pl.pallas_call(
            kernel,
            out_shape=jax.ShapeDtypeStruct((T_pad, H), x.dtype),
            grid_spec=pltpu.PrefetchScalarGridSpec(
                num_scalar_prefetch=0,
                grid=grid,
                in_specs=[
                    pl.BlockSpec((tm, H), lambda i, k: (i, 0), **x_kwargs),  # x tile
                    pl.BlockSpec((H, tk), lambda i, k: (0, k)),   # w1 K-chunk
                    pl.BlockSpec((1, tk), lambda i, k: (0, k)),   # b1 K-chunk
                    pl.BlockSpec((tk, H), lambda i, k: (k, 0)),   # w2 K-chunk
                    pl.BlockSpec((1, H), lambda i, k: (0, 0)),    # b2 (constant)
                ],
                out_specs=pl.BlockSpec((tm, H), lambda i, k: (i, 0)),
                scratch_shapes=scratch,
            ),
            compiler_params=pltpu.CompilerParams(
                dimension_semantics=("parallel", "arbitrary"),
                vmem_limit_bytes=int(vmem_limit),
            ),
            cost_estimate=cost,
        )(x_in, w1, b1, w2, b2)

    try:
        out = run(True)
    except Exception:
        # pipeline_mode=pl.Buffered(1) not supported on this jax build: retry
        # with default double-buffering.
        out = run(False)

    return out if T_pad == T else out[:T]


def ref_bloom_mlp(x, w1, b1, w2, b2, use_tanh_gelu=False):
    """Pure-JAX reference mirroring the kernel's mixed-precision numerics."""
    h = jnp.dot(x, w1, preferred_element_type=jnp.float32)
    h = h + b1.reshape(1, -1).astype(jnp.float32)
    if use_tanh_gelu:
        g = 0.5 * h * (1.0 + jnp.tanh(
            0.7978845608028654 * h * (1.0 + 0.044715 * h * h)))
    else:
        g = h * (0.5 * (1.0 + lax.erf(h * _INV_SQRT2)))
    y = jnp.dot(g.astype(w2.dtype), w2, preferred_element_type=jnp.float32)
    y = y + b2.reshape(1, -1).astype(jnp.float32)
    return y.astype(x.dtype)


def _make_inputs(key, T, H, dtype=jnp.float32):
    H4 = 4 * H
    kx, kw1, kb1, kw2, kb2 = jax.random.split(key, 5)
    x = jax.random.normal(kx, (T, H), dtype=dtype)
    w1 = jax.random.normal(kw1, (H, H4), dtype=dtype) * (1.0 / float(H) ** 0.5)
    b1 = jax.random.normal(kb1, (1, H4), dtype=dtype) * 0.02
    w2 = jax.random.normal(kw2, (H4, H), dtype=dtype) * (1.0 / float(H4) ** 0.5)
    b2 = jax.random.normal(kb2, (1, H), dtype=dtype) * 0.02
    return x, w1, b1, w2, b2


if __name__ == "__main__":
    key = jax.random.PRNGKey(0)
    k1, k2, k3 = jax.random.split(key, 3)

    # 1) Small shapes consistent with the module (num_tokens=8, hidden=32):
    #    single K step -> direct-write path, no accumulator.
    T, H = 8, 32
    x, w1, b1, w2, b2 = _make_inputs(k1, T, H, jnp.float32)
    out = jax.block_until_ready(bloom_mlp(x, w1, b1, w2, b2))
    ref = ref_bloom_mlp(x, w1, b1, w2, b2)
    assert out.shape == (T, H)
    assert jnp.allclose(out, ref, atol=1e-4, rtol=1e-4), "small f32 mismatch"

    # 2) K-tiled accumulation, multiple token tiles and a ragged T (exercises
    #    zero-padding + slicing of the token axis).
    T2, H2 = 200, 256
    x2, w12, b12, w22, b22 = _make_inputs(k2, T2, H2, jnp.float32)
    out2 = jax.block_until_ready(bloom_mlp(x2, w12, b12, w22, b22, tm=128, tk=256))
    ref2 = ref_bloom_mlp(x2, w12, b12, w22, b22)
    assert out2.shape == (T2, H2)
    assert jnp.allclose(out2, ref2, atol=1e-3, rtol=1e-3), "tiled f32 mismatch"

    # 3) bf16 production fast path (bf16 MXU inputs, f32 accumulation + GELU).
    T3, H3 = 128, 128
    x3, w13, b13, w23, b23 = _make_inputs(k3, T3, H3, jnp.bfloat16)
    out3 = jax.block_until_ready(bloom_mlp(x3, w13, b13, w23, b23, tm=64, tk=128))
    ref3 = ref_bloom_mlp(x3, w13, b13, w23, b23)
    assert out3.shape == (T3, H3)
    assert jnp.allclose(out3.astype(jnp.float32), ref3.astype(jnp.float32),
                        atol=3e-2, rtol=3e-2), "bf16 mismatch"

    print("KERNEL_OK")
</pallas_src>

<mosaic_0001>
module attributes {stable_mosaic.version = 11 : i64} {
  func.func @kernel(%arg0: i32, %arg1: i32, %arg2: memref<8x32xf32, #tpu.memory_space<vmem>>, %arg3: memref<32x128xf32, #tpu.memory_space<vmem>>, %arg4: memref<1x128xf32, #tpu.memory_space<vmem>>, %arg5: memref<128x32xf32, #tpu.memory_space<vmem>>, %arg6: memref<1x32xf32, #tpu.memory_space<vmem>>, %arg7: memref<8x32xf32, #tpu.memory_space<vmem>>) attributes {dimension_semantics = [#tpu.dimension_semantics<parallel>, #tpu.dimension_semantics<arbitrary>], iteration_bounds = array<i64: 1, 1>, scalar_prefetch = 0 : i64, scratch_operands = 0 : i64, tpu.core_type = #tpu.core_type<tc>, window_params = [{pipeline_mode = #tpu.pipeline_mode<synchronous>, transform_indices = @transform_0, window_bounds = array<i64: 8, 32>}, {transform_indices = @transform_1, window_bounds = array<i64: 32, 128>}, {transform_indices = @transform_2, window_bounds = array<i64: 1, 128>}, {transform_indices = @transform_3, window_bounds = array<i64: 128, 32>}, {pipeline_mode = #tpu.pipeline_mode<synchronous>, transform_indices = @transform_4, window_bounds = array<i64: 1, 32>}, {transform_indices = @transform_5, window_bounds = array<i64: 8, 32>}]} {
    %c0 = arith.constant 0 : index
    %c0_0 = arith.constant 0 : index
    %0 = vector.load %arg2[%c0, %c0_0] : memref<8x32xf32, #tpu.memory_space<vmem>>, vector<8x32xf32>
    %c0_1 = arith.constant 0 : index
    %c0_2 = arith.constant 0 : index
    %1 = vector.load %arg3[%c0_1, %c0_2] : memref<32x128xf32, #tpu.memory_space<vmem>>, vector<32x128xf32>
    %cst = arith.constant dense<0.000000e+00> : vector<8x128xf32>
    %2 = tpu.matmul %0, %1, %cst {dimension_numbers = #tpu.dot_dimension_numbers<[1], [0], [0], [1], [0, 0, 1, 1], [], []>} : vector<8x32xf32>, vector<32x128xf32>, vector<8x128xf32> -> vector<8x128xf32>
    %c0_3 = arith.constant 0 : index
    %c0_4 = arith.constant 0 : index
    %3 = vector.load %arg4[%c0_3, %c0_4] : memref<1x128xf32, #tpu.memory_space<vmem>>, vector<1x128xf32>
    %4 = vector.broadcast %3 : vector<1x128xf32> to vector<8x128xf32>
    %5 = arith.addf %2, %4 : vector<8x128xf32>
    %cst_5 = arith.constant 0.707106769 : f32
    %6 = vector.broadcast %cst_5 : f32 to vector<8x128xf32>
    %7 = arith.mulf %5, %6 : vector<8x128xf32>
    %8 = math.erf %7 : vector<8x128xf32>
    %cst_6 = arith.constant 1.000000e+00 : f32
    %9 = vector.broadcast %cst_6 : f32 to vector<8x128xf32>
    %10 = arith.addf %9, %8 : vector<8x128xf32>
    %cst_7 = arith.constant 5.000000e-01 : f32
    %11 = vector.broadcast %cst_7 : f32 to vector<8x128xf32>
    %12 = arith.mulf %11, %10 : vector<8x128xf32>
    %13 = arith.mulf %5, %12 : vector<8x128xf32>
    %c0_8 = arith.constant 0 : index
    %c0_9 = arith.constant 0 : index
    %14 = vector.load %arg5[%c0_8, %c0_9] : memref<128x32xf32, #tpu.memory_space<vmem>>, vector<128x32xf32>
    %cst_10 = arith.constant dense<0.000000e+00> : vector<8x32xf32>
    %15 = tpu.matmul %13, %14, %cst_10 {dimension_numbers = #tpu.dot_dimension_numbers<[1], [0], [0], [1], [0, 0, 1, 1], [], []>} : vector<8x128xf32>, vector<128x32xf32>, vector<8x32xf32> -> vector<8x32xf32>
    %c0_11 = arith.constant 0 : index
    %c0_12 = arith.constant 0 : index
    %16 = vector.load %arg6[%c0_11, %c0_12] : memref<1x32xf32, #tpu.memory_space<vmem>>, vector<1x32xf32>
    %17 = vector.broadcast %16 : vector<1x32xf32> to vector<8x32xf32>
    %18 = arith.addf %15, %17 : vector<8x32xf32>
    %c0_13 = arith.constant 0 : index
    %c0_14 = arith.constant 0 : index
    %19 = vector.load %arg7[%c0_13, %c0_14] : memref<8x32xf32, #tpu.memory_space<vmem>>, vector<8x32xf32>
    tpu.vector_store %arg7[%c0_13, %c0_14], %18 {strides = array<i32>} : memref<8x32xf32, #tpu.memory_space<vmem>>, vector<8x32xf32>,
    return
  }
  func.func @transform_0(%arg0: i32, %arg1: i32) -> (i32, i32) {
    %c0_i32 = arith.constant 0 : i32
    %c0_i32_0 = arith.constant 0 : i32
    return %arg0, %c0_i32 : i32, i32
  }
  func.func @transform_1(%arg0: i32, %arg1: i32) -> (i32, i32) {
    %c0_i32 = arith.constant 0 : i32
    %c0_i32_0 = arith.constant 0 : i32
    return %c0_i32, %arg1 : i32, i32
  }
  func.func @transform_2(%arg0: i32, %arg1: i32) -> (i32, i32) {
    %c0_i32 = arith.constant 0 : i32
    %c0_i32_0 = arith.constant 0 : i32
    return %c0_i32, %arg1 : i32, i32
  }
  func.func @transform_3(%arg0: i32, %arg1: i32) -> (i32, i32) {
    %c0_i32 = arith.constant 0 : i32
    %c0_i32_0 = arith.constant 0 : i32
    return %arg1, %c0_i32 : i32, i32
  }
  func.func @transform_4(%arg0: i32, %arg1: i32) -> (i32, i32) {
    %c0_i32 = arith.constant 0 : i32
    %c0_i32_0 = arith.constant 0 : i32
    %c0_i32_1 = arith.constant 0 : i32
    return %c0_i32, %c0_i32_0 : i32, i32
  }
  func.func @transform_5(%arg0: i32, %arg1: i32) -> (i32, i32) {
    %c0_i32 = arith.constant 0 : i32
    %c0_i32_0 = arith.constant 0 : i32
    return %arg0, %c0_i32 : i32, i32
  }
}

module attributes {stable_mosaic.version = 11 : i64} {
  func.func @kernel(%arg0: i32, %arg1: i32, %arg2: memref<8x32xf32, #tpu.memory_space<vmem>>, %arg3: memref<32x128xf32, #tpu.memory_space<vmem>>, %arg4: memref<1x128xf32, #tpu.memory_space<vmem>>, %arg5: memref<128x32xf32, #tpu.memory_space<vmem>>, %arg6: memref<1x32xf32, #tpu.memory_space<vmem>>, %arg7: memref<8x32xf32, #tpu.memory_space<vmem>>) attributes {dimension_semantics = [#tpu.dimension_semantics<parallel>, #tpu.dimension_semantics<arbitrary>], iteration_bounds = array<i64: 1, 1>, scalar_prefetch = 0 : i64, scratch_operands = 0 : i64, tpu.core_type = #tpu.core_type<tc>, window_params = [{transform_indices = @transform_0, window_bounds = array<i64: 8, 32>}, {transform_indices = @transform_1, window_bounds = array<i64: 32, 128>}, {transform_indices = @transform_2, window_bounds = array<i64: 1, 128>}, {transform_indices = @transform_3, window_bounds = array<i64: 128, 32>}, {pipeline_mode = #tpu.pipeline_mode<synchronous>, transform_indices = @transform_4, window_bounds = array<i64: 1, 32>}, {transform_indices = @transform_5, window_bounds = array<i64: 8, 32>}]} {
    %c0 = arith.constant 0 : index
    %c0_0 = arith.constant 0 : index
    %0 = vector.load %arg2[%c0, %c0_0] : memref<8x32xf32, #tpu.memory_space<vmem>>, vector<8x32xf32>
    %c0_1 = arith.constant 0 : index
    %c0_2 = arith.constant 0 : index
    %1 = vector.load %arg3[%c0_1, %c0_2] : memref<32x128xf32, #tpu.memory_space<vmem>>, vector<32x128xf32>
    %cst = arith.constant dense<0.000000e+00> : vector<8x128xf32>
    %2 = tpu.matmul %0, %1, %cst {dimension_numbers = #tpu.dot_dimension_numbers<[1], [0], [0], [1], [0, 0, 1, 1], [], []>} : vector<8x32xf32>, vector<32x128xf32>, vector<8x128xf32> -> vector<8x128xf32>
    %c0_3 = arith.constant 0 : index
    %c0_4 = arith.constant 0 : index
    %3 = vector.load %arg4[%c0_3, %c0_4] : memref<1x128xf32, #tpu.memory_space<vmem>>, vector<1x128xf32>
    %4 = vector.broadcast %3 : vector<1x128xf32> to vector<8x128xf32>
    %5 = arith.addf %2, %4 : vector<8x128xf32>
    %cst_5 = arith.constant 0.707106769 : f32
    %6 = vector.broadcast %cst_5 : f32 to vector<8x128xf32>
    %7 = arith.mulf %5, %6 : vector<8x128xf32>
    %8 = math.erf %7 : vector<8x128xf32>
    %cst_6 = arith.constant 1.000000e+00 : f32
    %9 = vector.broadcast %cst_6 : f32 to vector<8x128xf32>
    %10 = arith.addf %9, %8 : vector<8x128xf32>
    %cst_7 = arith.constant 5.000000e-01 : f32
    %11 = vector.broadcast %cst_7 : f32 to vector<8x128xf32>
    %12 = arith.mulf %11, %10 : vector<8x128xf32>
    %13 = arith.mulf %5, %12 : vector<8x128xf32>
    %c0_8 = arith.constant 0 : index
    %c0_9 = arith.constant 0 : index
    %14 = vector.load %arg5[%c0_8, %c0_9] : memref<128x32xf32, #tpu.memory_space<vmem>>, vector<128x32xf32>
    %cst_10 = arith.constant dense<0.000000e+00> : vector<8x32xf32>
    %15 = tpu.matmul %13, %14, %cst_10 {dimension_numbers = #tpu.dot_dimension_numbers<[1], [0], [0], [1], [0, 0, 1, 1], [], []>} : vector<8x128xf32>, vector<128x32xf32>, vector<8x32xf32> -> vector<8x32xf32>
    %c0_11 = arith.constant 0 : index
    %c0_12 = arith.constant 0 : index
    %16 = vector.load %arg6[%c0_11, %c0_12] : memref<1x32xf32, #tpu.memory_space<vmem>>, vector<1x32xf32>
    %17 = vector.broadcast %16 : vector<1x32xf32> to vector<8x32xf32>
    %18 = arith.addf %15, %17 : vector<8x32xf32>
    %c0_13 = arith.constant 0 : index
    %c0_14 = arith.constant 0 : index
    %19 = vector.load %arg7[%c0_13, %c0_14] : memref<8x32xf32, #tpu.memory_space<vmem>>, vector<8x32xf32>
    tpu.vector_store %arg7[%c0_13, %c0_14], %18 {strides = array<i32>} : memref<8x32xf32, #tpu.memory_space<vmem>>, vector<8x32xf32>,
    return
  }
  func.func @transform_0(%arg0: i32, %arg1: i32) -> (i32, i32) {
    %c0_i32 = arith.constant 0 : i32
    %c0_i32_0 = arith.constant 0 : i32
    return %arg0, %c0_i32 : i32, i32
  }
  func.func @transform_1(%arg0: i32, %arg1: i32) -> (i32, i32) {
    %c0_i32 = arith.constant 0 : i32
    %c0_i32_0 = arith.constant 0 : i32
    return %c0_i32, %arg1 : i32, i32
  }
  func.func @transform_2(%arg0: i32, %arg1: i32) -> (i32, i32) {
    %c0_i32 = arith.constant 0 : i32
    %c0_i32_0 = arith.constant 0 : i32
    return %c0_i32, %arg1 : i32, i32
  }
  func.func @transform_3(%arg0: i32, %arg1: i32) -> (i32, i32) {
    %c0_i32 = arith.constant 0 : i32
    %c0_i32_0 = arith.constant 0 : i32
    return %arg1, %c0_i32 : i32, i32
  }
  func.func @transform_4(%arg0: i32, %arg1: i32) -> (i32, i32) {
    %c0_i32 = arith.constant 0 : i32
    %c0_i32_0 = arith.constant 0 : i32
    %c0_i32_1 = arith.constant 0 : i32
    return %c0_i32, %c0_i32_0 : i32, i32
  }
  func.func @transform_5(%arg0: i32, %arg1: i32) -> (i32, i32) {
    %c0_i32 = arith.constant 0 : i32
    %c0_i32_0 = arith.constant 0 : i32
    return %arg0, %c0_i32 : i32, i32
  }
}

</mosaic_0001>

<llo_original>
// kernel: tpu_custom_call.1
$region0: #{tpu_custom_call.1}
  #allocation0 [shape = 'u32[]', space=smem, size = 0x4, offset = 0x4, fixed_abs, tag = 'smem constant byte address 0x4 - core index']
  #allocation1 [shape = 'u32[144,128]{1,0:T(1,128)}', space=vmem, size = 0x12000, scoped, tag = 'internal scratch']
  %s0 = inlined_call_operand.vmem [shape: f32[8,32], index: 0, kind: input, shape index: {}]
  %s1 = inlined_call_operand.vmem [shape: f32[32,128], index: 1, kind: input, shape index: {}]
  %s2 = inlined_call_operand.vmem [shape: f32[1,128], index: 2, kind: input, shape index: {}]
  %s3 = inlined_call_operand.vmem [shape: f32[128,32], index: 3, kind: input, shape index: {}]
  %s4 = inlined_call_operand.vmem [shape: f32[1,32], index: 4, kind: input, shape index: {}]
  %s5 = inlined_call_operand.hbm [shape: f32[8,32], index: 5, kind: output, shape index: {}]
  %s6 = sld [smem:[#allocation0]]
  $region30: #{tpu_custom_call.1} parent=0
    _
  %s8 = ssub.s32 1, %s6
  %s9 = scalar_select 0, %s8, %s6
  $region1: #{tpu_custom_call.1} parent=0
    #allocation2 [shape = 'u8[4096]{0}', space=vmem, size = 0x1000, scoped, tag = 'output window, operand 0, single buffered']
    #allocation3 [shape = 's32[1]{0}', space=sflag, size = 0x4, scoped, tag = 'scoped memory for tpu_custom_call.1']
    %10 = vsyncpa [#allocation3], 0
    // Predicated region
    $region2: #{tpu_custom_call.1} parent=1 // pred_check
      _
    $region3: #{tpu_custom_call.1} parent=1 // pred_check_branch
      %12 = sbr.rel (0) target = $region5
    $region4: #{tpu_custom_call.1} parent=1 // pred_region
      _
    $region5: #{tpu_custom_call.1} parent=1 // pred_fallthru
      _
    // Predicated region
    $region6: #{tpu_custom_call.1} parent=1 // pred_check
      _
    $region7: #{tpu_custom_call.1} parent=1 // pred_check_branch
      %14 = sbr.rel (0) target = $region9
    $region8: #{tpu_custom_call.1} parent=1 // pred_region
      _
    $region9: #{tpu_custom_call.1} parent=1 // pred_fallthru
      _
    // Predicated region
    $region10: #{tpu_custom_call.1} parent=1 // pred_check
      _
    $region11: #{tpu_custom_call.1} parent=1 // pred_check_branch
      %16 = sbr.rel (0) target = $region13
    $region12: #{tpu_custom_call.1} parent=1 // pred_region
      _
    $region13: #{tpu_custom_call.1} parent=1 // pred_fallthru
      _
    // Predicated region
    $region14: #{tpu_custom_call.1} parent=1 // pred_check
      _
    $region15: #{tpu_custom_call.1} parent=1 // pred_check_branch
      %18 = sbr.rel (0) target = $region17
    $region16: #{tpu_custom_call.1} parent=1 // pred_region
      _
    $region17: #{tpu_custom_call.1} parent=1 // pred_fallthru
      _
    // Predicated region
    $region18: #{tpu_custom_call.1} parent=1 // pred_check
      _
    $region19: #{tpu_custom_call.1} parent=1 // pred_check_branch
      %20 = sbr.rel (0) target = $region21
    $region20: #{tpu_custom_call.1} parent=1 // pred_region
      _
    $region21: #{tpu_custom_call.1} parent=1 // pred_fallthru
      _
    %v21 = vld [vmem:[%s0] sm:$0xff]
    %v22 = vld [vmem:[%s1] sm:$0xff]
    %v23 = vld [vmem:[%s1 + $0x8] sm:$0xff]
    %v24 = vld [vmem:[%s1 + $0x10] sm:$0xff]
    %v25 = vld [vmem:[%s1 + $0x18] sm:$0xff]
    %v26 = vld [vmem:[%s2] sm:$0x1]
    %v28 = vlaneseq
    %v29 = vshrl.u32 %v28, 7
    %v30 = vsub.s32 0, %v29
    %v31 = vrot.slane %v26, %v30
    %vm33 = vcmask 261120
    %v35 = vsel %vm33, %v21, 0
    %37 = vmatprep.subr.mxu0 0.0
    %38 = vmatpush1.msra.mxu0 0.0
    %39 = vmatprep.subr.mxu0 0.0
    %40 = vmatpush1.msra.mxu0 0.0
    %41 = vmatprep.subr.mxu0 0.0
    %42 = vmatpush1.msra.mxu0 0.0
    %43 = vmatprep.subr.mxu0 0.0
    %44 = vmatpush1.msra.mxu0 0.0
    %45 = vmatprep.subr.mxu0 0.0
    %46 = vmatpush1.msra.mxu0 0.0
    %47 = vmatprep.subr.mxu0 0.0
    %48 = vmatpush1.msra.mxu0 0.0
    %49 = vmatprep.subr.mxu0 0.0
    %50 = vmatpush1.msra.mxu0 0.0
    %51 = vmatprep.subr.mxu0 0.0
    %52 = vmatpush1.msra.mxu0 0.0
    %53 = vmatprep.subr.mxu0 0.0
    %54 = vmatpush1.msra.mxu0 0.0
    %55 = vmatprep.subr.mxu0 0.0
    %56 = vmatpush1.msra.mxu0 0.0
    %57 = vmatprep.subr.mxu0 0.0
    %58 = vmatpush1.msra.mxu0 0.0
    %59 = vmatprep.subr.mxu0 0.0
    %60 = vmatpush1.msra.mxu0 0.0
    %61 = vmatprep.subr.mxu0 0.0
    %62 = vmatpush1.msra.mxu0 %v25
    %63 = vmatprep.subr.mxu0 0.0
    %64 = vmatpush1.msra.mxu0 %v24
    %65 = vmatprep.subr.mxu0 0.0
    %66 = vmatpush1.msra.mxu0 %v23
    %67 = vmatprep.subr.mxu0 0.0
    %68 = vmatpush1.msra.mxu0 %v22
    %69 = vmatprep.subr.mxu0 0.0
    %70 = vmatpush2.msra.mxu0 0.0
    %71 = vmatprep.subr.mxu0 0.0
    %72 = vmatpush2.msra.mxu0 0.0
    %73 = vmatprep.subr.mxu0 0.0
    %74 = vmatpush2.msra.mxu0 0.0
    %75 = vmatprep.subr.mxu0 0.0
    %76 = vmatpush2.msra.mxu0 0.0
    %77 = vmatprep.subr.mxu0 0.0
    %78 = vmatpush2.msra.mxu0 0.0
    %79 = vmatprep.subr.mxu0 0.0
    %80 = vmatpush2.msra.mxu0 0.0
    %81 = vmatprep.subr.mxu0 0.0
    %82 = vmatpush2.msra.mxu0 0.0
    %83 = vmatprep.subr.mxu0 0.0
    %84 = vmatpush2.msra.mxu0 0.0
    %85 = vmatprep.subr.mxu0 0.0
    %86 = vmatpush2.msra.mxu0 0.0
    %87 = vmatprep.subr.mxu0 0.0
    %88 = vmatpush2.msra.mxu0 0.0
    %89 = vmatprep.subr.mxu0 0.0
    %90 = vmatpush2.msra.mxu0 0.0
    %91 = vmatprep.subr.mxu0 0.0
    %92 = vmatpush2.msra.mxu0 0.0
    %93 = vmatprep.subr.mxu0 0.0
    %94 = vmatpush2.msra.mxu0 0.0
    %95 = vmatprep.subr.mxu0 0.0
    %96 = vmatpush2.msra.mxu0 0.0
    %97 = vmatprep.subr.mxu0 0.0
    %98 = vmatpush2.msra.mxu0 0.0
    %99 = vmatprep.subr.mxu0 0.0
    %100 = vmatpush2.msra.mxu0 0.0
    %101 = vmatprep.mubr.f32.mxu0 0.0
    %102 = vmatmul.mubr.f32.gmra.mxu0 %v35
    %v103 = vpop.f32.mrf.mxu0
    %v104 = vadd.f32 %v31, %v103
    %v105 = vpop.f32.mrf.mxu0
    %106 = vdwg.mxu0
    %v107 = vmul.f32 %v104, 0.70710677
    %v108 = verf.f32.pop %v107
    %v109 = vadd.f32 %v108, 1.0
    %v110 = vmul.f32 %v109, 0.5
    %v111 = vmul.f32 %v104, %v110
    %v112 = vld [vmem:[%s3] sm:$0xff]
    %v113 = vld [vmem:[%s3 + $0x8] sm:$0xff]
    %v114 = vld [vmem:[%s3 + $0x10] sm:$0xff]
    %v115 = vld [vmem:[%s3 + $0x18] sm:$0xff]
    %v116 = vld [vmem:[%s3 + $0x20] sm:$0xff]
    %v117 = vld [vmem:[%s3 + $0x28] sm:$0xff]
    %v118 = vld [vmem:[%s3 + $0x30] sm:$0xff]
    %v119 = vld [vmem:[%s3 + $0x38] sm:$0xff]
    %v120 = vld [vmem:[%s3 + $0x40] sm:$0xff]
    %v121 = vld [vmem:[%s3 + $0x48] sm:$0xff]
    %v122 = vld [vmem:[%s3 + $0x50] sm:$0xff]
    %v123 = vld [vmem:[%s3 + $0x58] sm:$0xff]
    %v124 = vld [vmem:[%s3 + $0x60] sm:$0xff]
    %v125 = vld [vmem:[%s3 + $0x68] sm:$0xff]
    %v126 = vld [vmem:[%s3 + $0x70] sm:$0xff]
    %v127 = vld [vmem:[%s3 + $0x78] sm:$0xff]
    %v128 = vld [vmem:[%s4] sm:$0x1]
    %v130 = vlaneseq
    %v131 = vshrl.u32 %v130, 7
    %v132 = vsub.s32 0, %v131
    %v133 = vrot.slane %v128, %v132
    %135 = vmatprep.subr.mxu0 0.0
    %136 = vmatpush1.msra.mxu0 %v127
    %137 = vmatprep.subr.mxu0 0.0
    %138 = vmatpush1.msra.mxu0 %v126
    %139 = vmatprep.subr.mxu0 0.0
    %140 = vmatpush1.msra.mxu0 %v125
    %141 = vmatprep.subr.mxu0 0.0
    %142 = vmatpush1.msra.mxu0 %v124
    %143 = vmatprep.subr.mxu0 0.0
    %144 = vmatpush1.msra.mxu0 %v123
    %145 = vmatprep.subr.mxu0 0.0
    %146 = vmatpush1.msra.mxu0 %v122
    %147 = vmatprep.subr.mxu0 0.0
    %148 = vmatpush1.msra.mxu0 %v121
    %149 = vmatprep.subr.mxu0 0.0
    %150 = vmatpush1.msra.mxu0 %v120
    %151 = vmatprep.subr.mxu0 0.0
    %152 = vmatpush1.msra.mxu0 %v119
    %153 = vmatprep.subr.mxu0 0.0
    %154 = vmatpush1.msra.mxu0 %v118
    %155 = vmatprep.subr.mxu0 0.0
    %156 = vmatpush1.msra.mxu0 %v117
    %157 = vmatprep.subr.mxu0 0.0
    %158 = vmatpush1.msra.mxu0 %v116
    %159 = vmatprep.subr.mxu0 0.0
    %160 = vmatpush1.msra.mxu0 %v115
    %161 = vmatprep.subr.mxu0 0.0
    %162 = vmatpush1.msra.mxu0 %v114
    %163 = vmatprep.subr.mxu0 0.0
    %164 = vmatpush1.msra.mxu0 %v113
    %165 = vmatprep.subr.mxu0 0.0
    %166 = vmatpush1.msra.mxu0 %v112
    %167 = vmatprep.subr.mxu0 0.0
    %168 = vmatpush2.msra.mxu0 0.0
    %169 = vmatprep.subr.mxu0 0.0
    %170 = vmatpush2.msra.mxu0 0.0
    %171 = vmatprep.subr.mxu0 0.0
    %172 = vmatpush2.msra.mxu0 0.0
    %173 = vmatprep.subr.mxu0 0.0
    %174 = vmatpush2.msra.mxu0 0.0
    %175 = vmatprep.subr.mxu0 0.0
    %176 = vmatpush2.msra.mxu0 0.0
    %177 = vmatprep.subr.mxu0 0.0
    %178 = vmatpush2.msra.mxu0 0.0
    %179 = vmatprep.subr.mxu0 0.0
    %180 = vmatpush2.msra.mxu0 0.0
    %181 = vmatprep.subr.mxu0 0.0
    %182 = vmatpush2.msra.mxu0 0.0
    %183 = vmatprep.subr.mxu0 0.0
    %184 = vmatpush2.msra.mxu0 0.0
    %185 = vmatprep.subr.mxu0 0.0
    %186 = vmatpush2.msra.mxu0 0.0
    %187 = vmatprep.subr.mxu0 0.0
    %188 = vmatpush2.msra.mxu0 0.0
    %189 = vmatprep.subr.mxu0 0.0
    %190 = vmatpush2.msra.mxu0 0.0
    %191 = vmatprep.subr.mxu0 0.0
    %192 = vmatpush2.msra.mxu0 0.0
    %193 = vmatprep.subr.mxu0 0.0
    %194 = vmatpush2.msra.mxu0 0.0
    %195 = vmatprep.subr.mxu0 0.0
    %196 = vmatpush2.msra.mxu0 0.0
    %197 = vmatprep.subr.mxu0 0.0
    %198 = vmatpush2.msra.mxu0 0.0
    %199 = vmatprep.mubr.f32.mxu0 0.0
    %200 = vmatmul.mubr.f32.gmra.mxu0 %v111
    %v201 = vpop.f32.mrf.mxu0
    %v202 = vadd.f32 %v133, %v201
    %v203 = vpop.f32.mrf.mxu0
    %204 = vdwg.mxu0
    %205 = vst.msk [vmem:[#allocation2] sm:$0xff] %vm33, %v202
    // Predicated region
    $region22: #{tpu_custom_call.1} parent=1 // pred_check
      _
    $region23: #{tpu_custom_call.1} parent=1 // pred_check_branch
      %207 = sbr.rel (0) target = $region25
    $region24: #{tpu_custom_call.1} parent=1 // pred_region
      %s209 = ssub.s32 128, 128
      %210 = vsyncadd [#allocation3], %s209
      %s212 = sshll.u32 [#allocation2], 4
      %s213 = int_to_ptr.vmem [resolvable:$true] %s212
      %215 = dma.vmem_to_hbm [thread:$0]  %s213, 128, %s5, [#allocation3]
    $region25: #{tpu_custom_call.1} parent=1 // pred_fallthru
      _
    // Predicated region
    $region26: #{tpu_custom_call.1} parent=1 // pred_check
      _
    $region27: #{tpu_custom_call.1} parent=1 // pred_check_branch
      %217 = sbr.rel (0) target = $region29
    $region28: #{tpu_custom_call.1} parent=1 // pred_region
      %218 = dma.done [#allocation3], 128
    $region29: #{tpu_custom_call.1} parent=1 // pred_fallthru
      _
    %219 = vsyncpa [#allocation3], 1

// kernel: tpu_custom_call.1
$region0: #{tpu_custom_call.1}
  #allocation0 [shape = 'u32[]', space=smem, size = 0x4, offset = 0x4, fixed_abs, tag = 'smem constant byte address 0x4 - core index']
  #allocation1 [shape = 'u32[144,128]{1,0:T(1,128)}', space=vmem, size = 0x12000, scoped, tag = 'internal scratch']
  %s0 = inlined_call_operand.vmem [shape: f32[8,32], index: 0, kind: input, shape index: {}]
  %s1 = inlined_call_operand.vmem [shape: f32[32,128], index: 1, kind: input, shape index: {}]
  %s2 = inlined_call_operand.vmem [shape: f32[1,128], index: 2, kind: input, shape index: {}]
  %s3 = inlined_call_operand.vmem [shape: f32[128,32], index: 3, kind: input, shape index: {}]
  %s4 = inlined_call_operand.vmem [shape: f32[1,32], index: 4, kind: input, shape index: {}]
  %s5 = inlined_call_operand.hbm [shape: f32[8,32], index: 5, kind: output, shape index: {}]
  %s6 = sld [smem:[#allocation0]]
  $region30: #{tpu_custom_call.1} parent=0
    _
  %s8 = ssub.s32 1, %s6
  %s9 = scalar_select 0, %s8, %s6
  $region1: #{tpu_custom_call.1} parent=0
    #allocation2 [shape = 'u8[4096]{0}', space=vmem, size = 0x1000, scoped, tag = 'output window, operand 0, single buffered']
    #allocation3 [shape = 's32[1]{0}', space=sflag, size = 0x4, scoped, tag = 'scoped memory for tpu_custom_call.1']
    %10 = vsyncpa [#allocation3], 0
    // Predicated region
    $region2: #{tpu_custom_call.1} parent=1 // pred_check
      _
    $region3: #{tpu_custom_call.1} parent=1 // pred_check_branch
      %12 = sbr.rel (0) target = $region5
    $region4: #{tpu_custom_call.1} parent=1 // pred_region
      _
    $region5: #{tpu_custom_call.1} parent=1 // pred_fallthru
      _
    // Predicated region
    $region6: #{tpu_custom_call.1} parent=1 // pred_check
      _
    $region7: #{tpu_custom_call.1} parent=1 // pred_check_branch
      %14 = sbr.rel (0) target = $region9
    $region8: #{tpu_custom_call.1} parent=1 // pred_region
      _
    $region9: #{tpu_custom_call.1} parent=1 // pred_fallthru
      _
    // Predicated region
    $region10: #{tpu_custom_call.1} parent=1 // pred_check
      _
    $region11: #{tpu_custom_call.1} parent=1 // pred_check_branch
      %16 = sbr.rel (0) target = $region13
    $region12: #{tpu_custom_call.1} parent=1 // pred_region
      _
    $region13: #{tpu_custom_call.1} parent=1 // pred_fallthru
      _
    // Predicated region
    $region14: #{tpu_custom_call.1} parent=1 // pred_check
      _
    $region15: #{tpu_custom_call.1} parent=1 // pred_check_branch
      %18 = sbr.rel (0) target = $region17
    $region16: #{tpu_custom_call.1} parent=1 // pred_region
      _
    $region17: #{tpu_custom_call.1} parent=1 // pred_fallthru
      _
    // Predicated region
    $region18: #{tpu_custom_call.1} parent=1 // pred_check
      _
    $region19: #{tpu_custom_call.1} parent=1 // pred_check_branch
      %20 = sbr.rel (0) target = $region21
    $region20: #{tpu_custom_call.1} parent=1 // pred_region
      _
    $region21: #{tpu_custom_call.1} parent=1 // pred_fallthru
      _
    %v21 = vld [vmem:[%s0] sm:$0xff]
    %v22 = vld [vmem:[%s1] sm:$0xff]
    %v23 = vld [vmem:[%s1 + $0x8] sm:$0xff]
    %v24 = vld [vmem:[%s1 + $0x10] sm:$0xff]
    %v25 = vld [vmem:[%s1 + $0x18] sm:$0xff]
    %v26 = vld [vmem:[%s2] sm:$0x1]
    %v28 = vlaneseq
    %v29 = vshrl.u32 %v28, 7
    %v30 = vsub.s32 0, %v29
    %v31 = vrot.slane %v26, %v30
    %vm33 = vcmask 261120
    %v35 = vsel %vm33, %v21, 0
    %37 = vmatprep.subr.mxu0 0.0
    %38 = vmatpush1.msra.mxu0 0.0
    %39 = vmatprep.subr.mxu0 0.0
    %40 = vmatpush1.msra.mxu0 0.0
    %41 = vmatprep.subr.mxu0 0.0
    %42 = vmatpush1.msra.mxu0 0.0
    %43 = vmatprep.subr.mxu0 0.0
    %44 = vmatpush1.msra.mxu0 0.0
    %45 = vmatprep.subr.mxu0 0.0
    %46 = vmatpush1.msra.mxu0 0.0
    %47 = vmatprep.subr.mxu0 0.0
    %48 = vmatpush1.msra.mxu0 0.0
    %49 = vmatprep.subr.mxu0 0.0
    %50 = vmatpush1.msra.mxu0 0.0
    %51 = vmatprep.subr.mxu0 0.0
    %52 = vmatpush1.msra.mxu0 0.0
    %53 = vmatprep.subr.mxu0 0.0
    %54 = vmatpush1.msra.mxu0 0.0
    %55 = vmatprep.subr.mxu0 0.0
    %56 = vmatpush1.msra.mxu0 0.0
    %57 = vmatprep.subr.mxu0 0.0
    %58 = vmatpush1.msra.mxu0 0.0
    %59 = vmatprep.subr.mxu0 0.0
    %60 = vmatpush1.msra.mxu0 0.0
    %61 = vmatprep.subr.mxu0 0.0
    %62 = vmatpush1.msra.mxu0 %v25
    %63 = vmatprep.subr.mxu0 0.0
    %64 = vmatpush1.msra.mxu0 %v24
    %65 = vmatprep.subr.mxu0 0.0
    %66 = vmatpush1.msra.mxu0 %v23
    %67 = vmatprep.subr.mxu0 0.0
    %68 = vmatpush1.msra.mxu0 %v22
    %69 = vmatprep.subr.mxu0 0.0
    %70 = vmatpush2.msra.mxu0 0.0
    %71 = vmatprep.subr.mxu0 0.0
    %72 = vmatpush2.msra.mxu0 0.0
    %73 = vmatprep.subr.mxu0 0.0
    %74 = vmatpush2.msra.mxu0 0.0
    %75 = vmatprep.subr.mxu0 0.0
    %76 = vmatpush2.msra.mxu0 0.0
    %77 = vmatprep.subr.mxu0 0.0
    %78 = vmatpush2.msra.mxu0 0.0
    %79 = vmatprep.subr.mxu0 0.0
    %80 = vmatpush2.msra.mxu0 0.0
    %81 = vmatprep.subr.mxu0 0.0
    %82 = vmatpush2.msra.mxu0 0.0
    %83 = vmatprep.subr.mxu0 0.0
    %84 = vmatpush2.msra.mxu0 0.0
    %85 = vmatprep.subr.mxu0 0.0
    %86 = vmatpush2.msra.mxu0 0.0
    %87 = vmatprep.subr.mxu0 0.0
    %88 = vmatpush2.msra.mxu0 0.0
    %89 = vmatprep.subr.mxu0 0.0
    %90 = vmatpush2.msra.mxu0 0.0
    %91 = vmatprep.subr.mxu0 0.0
    %92 = vmatpush2.msra.mxu0 0.0
    %93 = vmatprep.subr.mxu0 0.0
    %94 = vmatpush2.msra.mxu0 0.0
    %95 = vmatprep.subr.mxu0 0.0
    %96 = vmatpush2.msra.mxu0 0.0
    %97 = vmatprep.subr.mxu0 0.0
    %98 = vmatpush2.msra.mxu0 0.0
    %99 = vmatprep.subr.mxu0 0.0
    %100 = vmatpush2.msra.mxu0 0.0
    %101 = vmatprep.mubr.f32.mxu0 0.0
    %102 = vmatmul.mubr.f32.gmra.mxu0 %v35
    %v103 = vpop.f32.mrf.mxu0
    %v104 = vadd.f32 %v31, %v103
    %v105 = vpop.f32.mrf.mxu0
    %106 = vdwg.mxu0
    %v107 = vmul.f32 %v104, 0.70710677
    %v108 = verf.f32.pop %v107
    %v109 = vadd.f32 %v108, 1.0
    %v110 = vmul.f32 %v109, 0.5
    %v111 = vmul.f32 %v104, %v110
    %v112 = vld [vmem:[%s3] sm:$0xff]
    %v113 = vld [vmem:[%s3 + $0x8] sm:$0xff]
    %v114 = vld [vmem:[%s3 + $0x10] sm:$0xff]
    %v115 = vld [vmem:[%s3 + $0x18] sm:$0xff]
    %v116 = vld [vmem:[%s3 + $0x20] sm:$0xff]
    %v117 = vld [vmem:[%s3 + $0x28] sm:$0xff]
    %v118 = vld [vmem:[%s3 + $0x30] sm:$0xff]
    %v119 = vld [vmem:[%s3 + $0x38] sm:$0xff]
    %v120 = vld [vmem:[%s3 + $0x40] sm:$0xff]
    %v121 = vld [vmem:[%s3 + $0x48] sm:$0xff]
    %v122 = vld [vmem:[%s3 + $0x50] sm:$0xff]
    %v123 = vld [vmem:[%s3 + $0x58] sm:$0xff]
    %v124 = vld [vmem:[%s3 + $0x60] sm:$0xff]
    %v125 = vld [vmem:[%s3 + $0x68] sm:$0xff]
    %v126 = vld [vmem:[%s3 + $0x70] sm:$0xff]
    %v127 = vld [vmem:[%s3 + $0x78] sm:$0xff]
    %v128 = vld [vmem:[%s4] sm:$0x1]
    %v130 = vlaneseq
    %v131 = vshrl.u32 %v130, 7
    %v132 = vsub.s32 0, %v131
    %v133 = vrot.slane %v128, %v132
    %135 = vmatprep.subr.mxu0 0.0
    %136 = vmatpush1.msra.mxu0 %v127
    %137 = vmatprep.subr.mxu0 0.0
    %138 = vmatpush1.msra.mxu0 %v126
    %139 = vmatprep.subr.mxu0 0.0
    %140 = vmatpush1.msra.mxu0 %v125
    %141 = vmatprep.subr.mxu0 0.0
    %142 = vmatpush1.msra.mxu0 %v124
    %143 = vmatprep.subr.mxu0 0.0
    %144 = vmatpush1.msra.mxu0 %v123
    %145 = vmatprep.subr.mxu0 0.0
    %146 = vmatpush1.msra.mxu0 %v122
    %147 = vmatprep.subr.mxu0 0.0
    %148 = vmatpush1.msra.mxu0 %v121
    %149 = vmatprep.subr.mxu0 0.0
    %150 = vmatpush1.msra.mxu0 %v120
    %151 = vmatprep.subr.mxu0 0.0
    %152 = vmatpush1.msra.mxu0 %v119
    %153 = vmatprep.subr.mxu0 0.0
    %154 = vmatpush1.msra.mxu0 %v118
    %155 = vmatprep.subr.mxu0 0.0
    %156 = vmatpush1.msra.mxu0 %v117
    %157 = vmatprep.subr.mxu0 0.0
    %158 = vmatpush1.msra.mxu0 %v116
    %159 = vmatprep.subr.mxu0 0.0
    %160 = vmatpush1.msra.mxu0 %v115
    %161 = vmatprep.subr.mxu0 0.0
    %162 = vmatpush1.msra.mxu0 %v114
    %163 = vmatprep.subr.mxu0 0.0
    %164 = vmatpush1.msra.mxu0 %v113
    %165 = vmatprep.subr.mxu0 0.0
    %166 = vmatpush1.msra.mxu0 %v112
    %167 = vmatprep.subr.mxu0 0.0
    %168 = vmatpush2.msra.mxu0 0.0
    %169 = vmatprep.subr.mxu0 0.0
    %170 = vmatpush2.msra.mxu0 0.0
    %171 = vmatprep.subr.mxu0 0.0
    %172 = vmatpush2.msra.mxu0 0.0
    %173 = vmatprep.subr.mxu0 0.0
    %174 = vmatpush2.msra.mxu0 0.0
    %175 = vmatprep.subr.mxu0 0.0
    %176 = vmatpush2.msra.mxu0 0.0
    %177 = vmatprep.subr.mxu0 0.0
    %178 = vmatpush2.msra.mxu0 0.0
    %179 = vmatprep.subr.mxu0 0.0
    %180 = vmatpush2.msra.mxu0 0.0
    %181 = vmatprep.subr.mxu0 0.0
    %182 = vmatpush2.msra.mxu0 0.0
    %183 = vmatprep.subr.mxu0 0.0
    %184 = vmatpush2.msra.mxu0 0.0
    %185 = vmatprep.subr.mxu0 0.0
    %186 = vmatpush2.msra.mxu0 0.0
    %187 = vmatprep.subr.mxu0 0.0
    %188 = vmatpush2.msra.mxu0 0.0
    %189 = vmatprep.subr.mxu0 0.0
    %190 = vmatpush2.msra.mxu0 0.0
    %191 = vmatprep.subr.mxu0 0.0
    %192 = vmatpush2.msra.mxu0 0.0
    %193 = vmatprep.subr.mxu0 0.0
    %194 = vmatpush2.msra.mxu0 0.0
    %195 = vmatprep.subr.mxu0 0.0
    %196 = vmatpush2.msra.mxu0 0.0
    %197 = vmatprep.subr.mxu0 0.0
    %198 = vmatpush2.msra.mxu0 0.0
    %199 = vmatprep.mubr.f32.mxu0 0.0
    %200 = vmatmul.mubr.f32.gmra.mxu0 %v111
    %v201 = vpop.f32.mrf.mxu0
    %v202 = vadd.f32 %v133, %v201
    %v203 = vpop.f32.mrf.mxu0
    %204 = vdwg.mxu0
    %205 = vst.msk [vmem:[#allocation2] sm:$0xff] %vm33, %v202
    // Predicated region
    $region22: #{tpu_custom_call.1} parent=1 // pred_check
      _
    $region23: #{tpu_custom_call.1} parent=1 // pred_check_branch
      %207 = sbr.rel (0) target = $region25
    $region24: #{tpu_custom_call.1} parent=1 // pred_region
      %s209 = ssub.s32 128, 128
      %210 = vsyncadd [#allocation3], %s209
      %s212 = sshll.u32 [#allocation2], 4
      %s213 = int_to_ptr.vmem [resolvable:$true] %s212
      %215 = dma.vmem_to_hbm [thread:$0]  %s213, 128, %s5, [#allocation3]
    $region25: #{tpu_custom_call.1} parent=1 // pred_fallthru
      _
    // Predicated region
    $region26: #{tpu_custom_call.1} parent=1 // pred_check
      _
    $region27: #{tpu_custom_call.1} parent=1 // pred_check_branch
      %217 = sbr.rel (0) target = $region29
    $region28: #{tpu_custom_call.1} parent=1 // pred_region
      %218 = dma.done [#allocation3], 128
    $region29: #{tpu_custom_call.1} parent=1 // pred_fallthru
      _
    %219 = vsyncpa [#allocation3], 1

</llo_original>
